<compile_context>
chip_gen: v5e
topology: v5e:2x2
jax: 0.10.0
libtpu: 0.0.40
codegen_flags: <defaults>
</compile_context>

<pallas_src>
import functools

import jax
import jax.numpy as jnp
from jax.experimental import pallas as pl
from jax.experimental.pallas import tpu as pltpu


def _round_up(x, m):
    return ((x + m - 1) // m) * m


def _grabcut_warp_kernel(flags_ref, theta_ref, coords_ref, out_ref, *,
                         W, H, cx, cy, r2, disc_inside, valid_bbox):
    """One grid step handles a (block_b, tile_hw) output tile.

    flags_ref:  SMEM (nb,)              int32   -- per-batch-block "any object" flag
    theta_ref:  VMEM (block_b, 128)     float32 -- pre-scaled affine coeffs (lanes 0..5),
                                                   per-row has_object flag (lane 6)
    coords_ref: VMEM (2, tile_hw)       float32 -- [xn; yn] normalized base grid slice
    out_ref:    VMEM (block_b, tile_hw) float32 -- warped segmentation tile
    """
    if not valid_bbox:
        # Invalid bbox (trace-time constant): the whole output is zero.
        out_ref[...] = jnp.zeros_like(out_ref)
        return

    blk_flag = flags_ref[pl.program_id(1)]

    @pl.when(blk_flag == 0)
    def _skip():
        out_ref[...] = jnp.zeros_like(out_ref)

    @pl.when(blk_flag != 0)
    def _compute():
        th = theta_ref[...]                                  # (block_b, 128)
        a00 = th[:, 0:1]
        a01 = th[:, 1:2]
        a02 = th[:, 2:3]
        a10 = th[:, 3:4]
        a11 = th[:, 4:5]
        a12 = th[:, 5:6]
        hob = th[:, 6:7]                                     # per-row has_object (0/1)

        xn = coords_ref[0:1, :]                              # (1, tile_hw)
        yn = coords_ref[1:2, :]

        # affine_grid + align_corners=True pixel mapping, pre-folded into theta.
        px = a00 * xn + a01 * yn + a02                       # (block_b, tile_hw)
        py = a10 * xn + a11 * yn + a12

        x0 = jnp.floor(px)
        y0 = jnp.floor(py)
        wx1 = px - x0
        wy1 = py - y0
        wx0 = 1.0 - wx1
        wy0 = 1.0 - wy1

        # Shared sub-expressions for the four bilinear corners of the analytic
        # GC_PR_FGD disc (value 1 inside, 0 outside).
        dx0 = x0 - cx
        dy0 = y0 - cy
        dx1 = dx0 + 1.0
        dy1 = dy0 + 1.0
        dx0s = dx0 * dx0
        dx1s = dx1 * dx1
        dy0s = dy0 * dy0
        dy1s = dy1 * dy1

        m00 = (dx0s + dy0s) <= r2
        m10 = (dx1s + dy0s) <= r2
        m01 = (dx0s + dy1s) <= r2
        m11 = (dx1s + dy1s) <= r2

        if not disc_inside:
            # Disc touches the frame edge: add grid_sample zeros-padding test
            # (one compare pair per axis value, shared across corners).
            x1 = x0 + 1.0
            y1 = y0 + 1.0
            inx0 = (x0 >= 0.0) & (x0 <= W - 1.0)
            inx1 = (x1 >= 0.0) & (x1 <= W - 1.0)
            iny0 = (y0 >= 0.0) & (y0 <= H - 1.0)
            iny1 = (y1 >= 0.0) & (y1 <= H - 1.0)
            m00 = m00 & inx0 & iny0
            m10 = m10 & inx1 & iny0
            m01 = m01 & inx0 & iny1
            m11 = m11 & inx1 & iny1

        acc = (jnp.where(m00, wx0 * wy0, 0.0)
               + jnp.where(m10, wx1 * wy0, 0.0)
               + jnp.where(m01, wx0 * wy1, 0.0)
               + jnp.where(m11, wx1 * wy1, 0.0))

        out_ref[...] = (acc * hob).astype(out_ref.dtype)


def grabcut_segmenter_forward(x, padding):
    """x: dict with 'img_th_stn' (B,1,H,W) float32 and 'theta_inv' (B,2,3) float32."""
    img = x["img_th_stn"]
    theta_inv = x["theta_inv"]

    B, C, H, W = img.shape
    assert C == 1
    assert H > 1 and W > 1, "degenerate H/W would divide by zero in grid normalization"

    HW = H * W

    # ---- tile selection: ~<=256 KiB compute block (fits v5e/v6e/v7x scoped VMEM
    #      even with the ~12x live-temporary multiplier) ---------------------------
    MAX_TILE_HW = 2048
    tile_hw = _round_up(HW, 128) if HW <= MAX_TILE_HW else MAX_TILE_HW
    HWp = _round_up(HW, tile_hw)

    TARGET_BLOCK_BYTES = 256 * 1024
    block_b = max(8, min(256, (TARGET_BLOCK_BYTES // (tile_hw * 4)) // 8 * 8))
    block_b = min(block_b, _round_up(B, 8))     # don't pad batch beyond one block
    Bp = _round_up(B, block_b)
    nb = Bp // block_b
    nh = HWp // tile_hw

    # ---- static circle parameters (trace-time, matches cv.circle int truncation) --
    bbox = [padding, padding, W - 2 * padding, H - 2 * padding]
    valid_bbox = (bbox[0] >= 0 and bbox[1] >= 0
                  and 0 < bbox[2] < W and 0 < bbox[3] < H)
    if valid_bbox:
        cx = float(int(bbox[0] + bbox[2] / 2))
        cy = float(int(bbox[1] + bbox[3] / 2))
        r = float(int(bbox[3] / 2))
    else:
        cx = cy = r = 0.0
    r2 = r * r
    disc_inside = (valid_bbox
                   and cx - r >= 0.0 and cx + r <= W - 1.0
                   and cy - r >= 0.0 and cy + r <= H - 1.0)

    # ---- has_object hoisted to the wrapper (per-row scalar; image never enters
    #      the kernel). Padded batch rows explicitly get flag 0. --------------------
    img_rows = img.astype(jnp.float32).reshape(B, HW)
    hob = (jnp.max(img_rows, axis=1) - jnp.min(img_rows, axis=1)) > 0.1    # (B,)
    hob_pad = jnp.zeros((Bp,), jnp.float32).at[:B].set(hob.astype(jnp.float32))

    # Per-batch-block skip flag (scalar prefetch): any row in the block has an object.
    block_flags = (jnp.max(hob_pad.reshape(nb, block_b), axis=1) > 0.0).astype(jnp.int32)

    # ---- fold align_corners=True normalization into theta (6 scalars per row) -----
    t = theta_inv.astype(jnp.float32).reshape(B, 6)
    sx = 0.5 * (W - 1)
    sy = 0.5 * (H - 1)
    A = jnp.stack(
        [sx * t[:, 0], sx * t[:, 1], sx * (t[:, 2] + 1.0),
         sy * t[:, 3], sy * t[:, 4], sy * (t[:, 5] + 1.0)],
        axis=1,
    )                                                                      # (B, 6)
    theta_pad = jnp.zeros((Bp, 128), jnp.float32)
    theta_pad = theta_pad.at[:B, :6].set(A)
    theta_pad = theta_pad.at[:, 6].set(hob_pad)

    # ---- grid-invariant normalized base-grid coords (computed once) ---------------
    p = jnp.arange(HWp, dtype=jnp.int32)
    xpix = (p % W).astype(jnp.float32)
    ypix = jnp.minimum(p // W, H - 1).astype(jnp.float32)   # clamp padded tail
    xn = 2.0 * xpix / (W - 1) - 1.0
    yn = 2.0 * ypix / (H - 1) - 1.0
    coords = jnp.stack([xn, yn], axis=0)                    # (2, HWp)

    kernel = functools.partial(
        _grabcut_warp_kernel,
        W=W, H=H, cx=cx, cy=cy, r2=r2,
        disc_inside=disc_inside, valid_bbox=valid_bbox,
    )

    out_flat = pl.pallas_call(
        kernel,
        out_shape=jax.ShapeDtypeStruct((Bp, HWp), jnp.float32),
        grid_spec=pltpu.PrefetchScalarGridSpec(
            num_scalar_prefetch=1,
            # HW tiles outer, batch blocks inner -> coords block index is constant
            # along the inner axis (stays resident, no re-DMA).
            grid=(nh, nb),
            in_specs=[
                pl.BlockSpec((block_b, 128), lambda h, b, flags: (b, 0)),  # theta rows
                pl.BlockSpec((2, tile_hw), lambda h, b, flags: (0, h)),    # base grid
            ],
            out_specs=pl.BlockSpec((block_b, tile_hw), lambda h, b, flags: (b, h)),
        ),
        compiler_params=pltpu.CompilerParams(
            dimension_semantics=("parallel", "parallel"),
        ),
    )(block_flags, theta_pad, coords)

    return out_flat[:B, :HW].reshape(B, 1, H, W)


if __name__ == "__main__":
    B, H, W = 2, 16, 16
    PADDING = 2  # module "parameter" (no learnable weights in this module)

    key = jax.random.PRNGKey(0)
    k_img, k_theta = jax.random.split(key)

    # Thresholded STN image in [0, 1] (batch 0 has an object; batch 1 is flat).
    img = jax.random.uniform(k_img, (B, 1, H, W), dtype=jnp.float32)
    img = img.at[1].set(0.05)  # second batch: max - min <= 0.1 -> zero segmentation

    # theta_inv: near-identity affine with a small deterministic perturbation.
    ident = jnp.broadcast_to(
        jnp.array([[1.0, 0.0, 0.0], [0.0, 1.0, 0.0]], jnp.float32), (B, 2, 3)
    )
    theta_inv = ident + 0.05 * jax.random.normal(k_theta, (B, 2, 3), dtype=jnp.float32)

    x = {"img_th_stn": img, "theta_inv": theta_inv}

    out = grabcut_segmenter_forward(x, PADDING)
    out = jax.block_until_ready(out)

    assert out.shape == (B, 1, H, W)
    assert bool(jnp.all(jnp.isfinite(out)))
    assert bool(jnp.all(out[1] == 0.0))          # no-object batch stays zero
    assert float(jnp.max(out[0])) > 0.0          # object batch produces a mask
    print("KERNEL_OK")
</pallas_src>

<mosaic_0001>
module attributes {stable_mosaic.version = 11 : i64} {
  func.func @_grabcut_warp_kernel(%arg0: i32, %arg1: i32, %arg2: memref<1xi32, #tpu.memory_space<smem>>, %arg3: memref<8x128xf32, #tpu.memory_space<vmem>>, %arg4: memref<2x256xf32, #tpu.memory_space<vmem>>, %arg5: memref<8x256xf32, #tpu.memory_space<vmem>>) attributes {dimension_semantics = [#tpu.dimension_semantics<parallel>, #tpu.dimension_semantics<parallel>], iteration_bounds = array<i64: 1, 1>, scalar_prefetch = 1 : i64, scratch_operands = 0 : i64, tpu.core_type = #tpu.core_type<tc>, window_params = [{transform_indices = @transform_0, window_bounds = array<i64: 8, 128>}, {transform_indices = @transform_1, window_bounds = array<i64: 2, 256>}, {transform_indices = @transform_2, window_bounds = array<i64: 8, 256>}]} {
    %0 = arith.index_cast %arg1 : i32 to index
    %1 = memref.load %arg2[%0] : memref<1xi32, #tpu.memory_space<smem>>
    %c0_i32 = arith.constant 0 : i32
    %2 = arith.cmpi eq, %1, %c0_i32 : i32
    %3 = arith.extui %2 : i1 to i32
    %c0_i32_0 = arith.constant 0 : i32
    %4 = arith.cmpi ne, %3, %c0_i32_0 : i32
    scf.if %4 {
      %cst = arith.constant 0.000000e+00 : f32
      %8 = vector.broadcast %cst : f32 to vector<8x256xf32>
      %c0 = arith.constant 0 : index
      %c0_3 = arith.constant 0 : index
      %9 = vector.load %arg5[%c0, %c0_3] : memref<8x256xf32, #tpu.memory_space<vmem>>, vector<8x256xf32>
      tpu.vector_store %arg5[%c0, %c0_3], %8 {strides = array<i32>} : memref<8x256xf32, #tpu.memory_space<vmem>>, vector<8x256xf32>,
    } else {
    }
    %c0_i32_1 = arith.constant 0 : i32
    %5 = arith.cmpi ne, %1, %c0_i32_1 : i32
    %6 = arith.extui %5 : i1 to i32
    %c0_i32_2 = arith.constant 0 : i32
    %7 = arith.cmpi ne, %6, %c0_i32_2 : i32
    scf.if %7 {
      %c0 = arith.constant 0 : index
      %c0_3 = arith.constant 0 : index
      %8 = vector.load %arg3[%c0, %c0_3] : memref<8x128xf32, #tpu.memory_space<vmem>>, vector<8x128xf32>
      %9 = vector.extract_strided_slice %8 {offsets = [0, 0], sizes = [8, 1], strides = [1, 1]} : vector<8x128xf32> to vector<8x1xf32>
      %10 = vector.extract_strided_slice %8 {offsets = [0, 1], sizes = [8, 1], strides = [1, 1]} : vector<8x128xf32> to vector<8x1xf32>
      %11 = vector.extract_strided_slice %8 {offsets = [0, 2], sizes = [8, 1], strides = [1, 1]} : vector<8x128xf32> to vector<8x1xf32>
      %12 = vector.extract_strided_slice %8 {offsets = [0, 3], sizes = [8, 1], strides = [1, 1]} : vector<8x128xf32> to vector<8x1xf32>
      %13 = vector.extract_strided_slice %8 {offsets = [0, 4], sizes = [8, 1], strides = [1, 1]} : vector<8x128xf32> to vector<8x1xf32>
      %14 = vector.extract_strided_slice %8 {offsets = [0, 5], sizes = [8, 1], strides = [1, 1]} : vector<8x128xf32> to vector<8x1xf32>
      %15 = vector.extract_strided_slice %8 {offsets = [0, 6], sizes = [8, 1], strides = [1, 1]} : vector<8x128xf32> to vector<8x1xf32>
      %c0_4 = arith.constant 0 : index
      %c0_5 = arith.constant 0 : index
      %16 = vector.load %arg4[%c0_4, %c0_5] : memref<2x256xf32, #tpu.memory_space<vmem>>, vector<1x256xf32>
      %c1 = arith.constant 1 : index
      %c0_6 = arith.constant 0 : index
      %17 = vector.load %arg4[%c1, %c0_6] : memref<2x256xf32, #tpu.memory_space<vmem>>, vector<1x256xf32>
      %18 = vector.broadcast %9 : vector<8x1xf32> to vector<8x256xf32>
      %19 = vector.broadcast %16 : vector<1x256xf32> to vector<8x256xf32>
      %20 = arith.mulf %18, %19 : vector<8x256xf32>
      %21 = vector.broadcast %10 : vector<8x1xf32> to vector<8x256xf32>
      %22 = vector.broadcast %17 : vector<1x256xf32> to vector<8x256xf32>
      %23 = arith.mulf %21, %22 : vector<8x256xf32>
      %24 = arith.addf %20, %23 : vector<8x256xf32>
      %25 = vector.broadcast %11 : vector<8x1xf32> to vector<8x256xf32>
      %26 = arith.addf %24, %25 : vector<8x256xf32>
      %27 = vector.broadcast %12 : vector<8x1xf32> to vector<8x256xf32>
      %28 = vector.broadcast %16 : vector<1x256xf32> to vector<8x256xf32>
      %29 = arith.mulf %27, %28 : vector<8x256xf32>
      %30 = vector.broadcast %13 : vector<8x1xf32> to vector<8x256xf32>
      %31 = vector.broadcast %17 : vector<1x256xf32> to vector<8x256xf32>
      %32 = arith.mulf %30, %31 : vector<8x256xf32>
      %33 = arith.addf %29, %32 : vector<8x256xf32>
      %34 = vector.broadcast %14 : vector<8x1xf32> to vector<8x256xf32>
      %35 = arith.addf %33, %34 : vector<8x256xf32>
      %36 = math.floor %26 : vector<8x256xf32>
      %37 = math.floor %35 : vector<8x256xf32>
      %38 = arith.subf %26, %36 : vector<8x256xf32>
      %39 = arith.subf %35, %37 : vector<8x256xf32>
      %cst = arith.constant 1.000000e+00 : f32
      %40 = vector.broadcast %cst : f32 to vector<8x256xf32>
      %41 = arith.subf %40, %38 : vector<8x256xf32>
      %cst_7 = arith.constant 1.000000e+00 : f32
      %42 = vector.broadcast %cst_7 : f32 to vector<8x256xf32>
      %43 = arith.subf %42, %39 : vector<8x256xf32>
      %cst_8 = arith.constant 8.000000e+00 : f32
      %44 = vector.broadcast %cst_8 : f32 to vector<8x256xf32>
      %45 = arith.subf %36, %44 : vector<8x256xf32>
      %cst_9 = arith.constant 8.000000e+00 : f32
      %46 = vector.broadcast %cst_9 : f32 to vector<8x256xf32>
      %47 = arith.subf %37, %46 : vector<8x256xf32>
      %cst_10 = arith.constant 1.000000e+00 : f32
      %48 = vector.broadcast %cst_10 : f32 to vector<8x256xf32>
      %49 = arith.addf %45, %48 : vector<8x256xf32>
      %cst_11 = arith.constant 1.000000e+00 : f32
      %50 = vector.broadcast %cst_11 : f32 to vector<8x256xf32>
      %51 = arith.addf %47, %50 : vector<8x256xf32>
      %52 = arith.mulf %45, %45 : vector<8x256xf32>
      %53 = arith.mulf %49, %49 : vector<8x256xf32>
      %54 = arith.mulf %47, %47 : vector<8x256xf32>
      %55 = arith.mulf %51, %51 : vector<8x256xf32>
      %56 = arith.addf %52, %54 : vector<8x256xf32>
      %cst_12 = arith.constant 3.600000e+01 : f32
      %57 = vector.broadcast %cst_12 : f32 to vector<8x256xf32>
      %58 = arith.cmpf ole, %56, %57 : vector<8x256xf32>
      %59 = arith.addf %53, %54 : vector<8x256xf32>
      %cst_13 = arith.constant 3.600000e+01 : f32
      %60 = vector.broadcast %cst_13 : f32 to vector<8x256xf32>
      %61 = arith.cmpf ole, %59, %60 : vector<8x256xf32>
      %62 = arith.addf %52, %55 : vector<8x256xf32>
      %cst_14 = arith.constant 3.600000e+01 : f32
      %63 = vector.broadcast %cst_14 : f32 to vector<8x256xf32>
      %64 = arith.cmpf ole, %62, %63 : vector<8x256xf32>
      %65 = arith.addf %53, %55 : vector<8x256xf32>
      %cst_15 = arith.constant 3.600000e+01 : f32
      %66 = vector.broadcast %cst_15 : f32 to vector<8x256xf32>
      %67 = arith.cmpf ole, %65, %66 : vector<8x256xf32>
      %68 = arith.mulf %41, %43 : vector<8x256xf32>
      %cst_16 = arith.constant 0.000000e+00 : f32
      %69 = vector.broadcast %cst_16 : f32 to vector<8x256xf32>
      %70 = arith.select %58, %68, %69 : vector<8x256xi1>, vector<8x256xf32>
      %71 = arith.mulf %38, %43 : vector<8x256xf32>
      %cst_17 = arith.constant 0.000000e+00 : f32
      %72 = vector.broadcast %cst_17 : f32 to vector<8x256xf32>
      %73 = arith.select %61, %71, %72 : vector<8x256xi1>, vector<8x256xf32>
      %74 = arith.addf %70, %73 : vector<8x256xf32>
      %75 = arith.mulf %41, %39 : vector<8x256xf32>
      %cst_18 = arith.constant 0.000000e+00 : f32
      %76 = vector.broadcast %cst_18 : f32 to vector<8x256xf32>
      %77 = arith.select %64, %75, %76 : vector<8x256xi1>, vector<8x256xf32>
      %78 = arith.addf %74, %77 : vector<8x256xf32>
      %79 = arith.mulf %38, %39 : vector<8x256xf32>
      %cst_19 = arith.constant 0.000000e+00 : f32
      %80 = vector.broadcast %cst_19 : f32 to vector<8x256xf32>
      %81 = arith.select %67, %79, %80 : vector<8x256xi1>, vector<8x256xf32>
      %82 = arith.addf %78, %81 : vector<8x256xf32>
      %83 = vector.broadcast %15 : vector<8x1xf32> to vector<8x256xf32>
      %84 = arith.mulf %82, %83 : vector<8x256xf32>
      %c0_20 = arith.constant 0 : index
      %c0_21 = arith.constant 0 : index
      %85 = vector.load %arg5[%c0_20, %c0_21] : memref<8x256xf32, #tpu.memory_space<vmem>>, vector<8x256xf32>
      tpu.vector_store %arg5[%c0_20, %c0_21], %84 {strides = array<i32>} : memref<8x256xf32, #tpu.memory_space<vmem>>, vector<8x256xf32>,
    } else {
    }
    return
  }
  func.func @transform_0(%arg0: i32, %arg1: i32, %arg2: memref<1xi32, #tpu.memory_space<smem>>) -> (i32, i32) {
    %c0_i32 = arith.constant 0 : i32
    %c0_i32_0 = arith.constant 0 : i32
    return %arg1, %c0_i32 : i32, i32
  }
  func.func @transform_1(%arg0: i32, %arg1: i32, %arg2: memref<1xi32, #tpu.memory_space<smem>>) -> (i32, i32) {
    %c0_i32 = arith.constant 0 : i32
    %c0_i32_0 = arith.constant 0 : i32
    return %c0_i32, %arg0 : i32, i32
  }
  func.func @transform_2(%arg0: i32, %arg1: i32, %arg2: memref<1xi32, #tpu.memory_space<smem>>) -> (i32, i32) {
    %c0_i32 = arith.constant 0 : i32
    return %arg1, %arg0 : i32, i32
  }
}

</mosaic_0001>

<llo_original>
// kernel: tpu_custom_call.1
$region0: #{tpu_custom_call.1}
  #allocation0 [shape = 'u32[]', space=smem, size = 0x4, offset = 0x4, fixed_abs, tag = 'smem constant byte address 0x4 - core index']
  #allocation1 [shape = 'u32[72,128]{1,0:T(1,128)}', space=vmem, size = 0x9000, scoped, tag = 'internal scratch']
  #allocation2 [shape = 's32[1]{0}', space=sflag, size = 0x4, scoped, tag = 'scoped memory for tpu_custom_call.1']
  #allocation3 [shape = 's32[1]{0:T(128)S(6)}', space=smem, size = 0x200, scoped, tag = 'prefetched SMEM operand 0']
  %s0 = inlined_call_operand.<no memory space> [shape: s32[1], index: 0, kind: input, shape index: {}]
  %s1 = inlined_call_operand.hbm [shape: f32[8,128], index: 1, kind: input, shape index: {}]
  %s2 = inlined_call_operand.hbm [shape: f32[2,256], index: 2, kind: input, shape index: {}]
  %s3 = inlined_call_operand.hbm [shape: f32[8,256], index: 3, kind: output, shape index: {}]
  %s4 = sld [smem:[#allocation0]]
  $region34: #{tpu_custom_call.1} parent=0
    _
  %s6 = ssub.s32 1, %s4
  %s7 = scalar_select 0, %s6, %s4
  %8 = sst [smem:[#allocation3]] %s0
  $region1: #{tpu_custom_call.1} parent=0
    #allocation4 [shape = 'u8[4096]{0}', space=vmem, size = 0x1000, scoped, tag = 'input window, operand 1, single buffered']
    #allocation5 [shape = 's32[1]{0}', space=sflag, size = 0x4, scoped, tag = 'scoped memory for tpu_custom_call.1']
    #allocation6 [shape = 's32[1]{0}', space=sflag, size = 0x4, scoped, tag = 'scoped memory for tpu_custom_call.1']
    #allocation7 [shape = 'u8[2048]{0}', space=vmem, size = 0x800, scoped, tag = 'input window, operand 2, single buffered']
    #allocation8 [shape = 's32[1]{0}', space=sflag, size = 0x4, scoped, tag = 'scoped memory for tpu_custom_call.1']
    #allocation9 [shape = 'u8[8192]{0}', space=vmem, size = 0x2000, scoped, tag = 'output window, operand 0, single buffered']
    %9 = vsyncpa [#allocation5], 0
    %10 = vsyncpa [#allocation8], 0
    %11 = vsyncpa [#allocation6], 0
    // Predicated region
    $region2: #{tpu_custom_call.1} parent=1 // pred_check
      _
    $region3: #{tpu_custom_call.1} parent=1 // pred_check_branch
      %13 = sbr.rel (0) target = $region5
    $region4: #{tpu_custom_call.1} parent=1 // pred_region
      %15 = vsyncadd [#allocation5], 0
      %s17 = sshll.u32 %s1, 4
      %s18 = int_to_ptr.hbm [resolvable:$true] %s17
      %s19 = sshll.u32 [#allocation4], 4
      %s20 = int_to_ptr.vmem [resolvable:$true] %s19
      %22 = dma.hbm_to_vmem [thread:$0]  %s18, 128, %s20, [#allocation5]
    $region5: #{tpu_custom_call.1} parent=1 // pred_fallthru
      _
    // Predicated region
    $region6: #{tpu_custom_call.1} parent=1 // pred_check
      _
    $region7: #{tpu_custom_call.1} parent=1 // pred_check_branch
      %24 = sbr.rel (0) target = $region9
    $region8: #{tpu_custom_call.1} parent=1 // pred_region
      %26 = vsyncadd [#allocation8], 0
      %s28 = sshll.u32 %s2, 4
      %s29 = int_to_ptr.hbm [resolvable:$true] %s28
      %s30 = sshll.u32 [#allocation7], 4
      %s31 = int_to_ptr.vmem [resolvable:$true] %s30
      %33 = dma.hbm_to_vmem [thread:$0]  %s29, 64, %s31, [#allocation8]
    $region9: #{tpu_custom_call.1} parent=1 // pred_fallthru
      _
    // Predicated region
    $region10: #{tpu_custom_call.1} parent=1 // pred_check
      _
    $region11: #{tpu_custom_call.1} parent=1 // pred_check_branch
      %35 = sbr.rel (0) target = $region13
    $region12: #{tpu_custom_call.1} parent=1 // pred_region
      %37 = dma.done [#allocation5], 128
    $region13: #{tpu_custom_call.1} parent=1 // pred_fallthru
      _
    // Predicated region
    $region14: #{tpu_custom_call.1} parent=1 // pred_check
      _
    $region15: #{tpu_custom_call.1} parent=1 // pred_check_branch
      %39 = sbr.rel (0) target = $region17
    $region16: #{tpu_custom_call.1} parent=1 // pred_region
      %41 = dma.done [#allocation8], 64
    $region17: #{tpu_custom_call.1} parent=1 // pred_fallthru
      _
    %s42 = sld [smem:[#allocation3]]
    %p43 = scmp.eq.s32.totalorder %s42, 0
    // Predicated region
    $region18: #{tpu_custom_call.1} parent=1 // pred_check
      %p44 = pneg %p43
    $region19: #{tpu_custom_call.1} parent=1 // pred_check_branch
      %46 = sbr.rel (%p44) target = $region21
    $region20: #{tpu_custom_call.1} parent=1 // pred_region
      %47 = vst [vmem:[#allocation9] sm:$0xff] 0.0
      %48 = vst [vmem:[#allocation9 + $0x8] sm:$0xff] 0.0
    $region21: #{tpu_custom_call.1} parent=1 // pred_fallthru
      _
    %p49 = scmp.ne.s32.totalorder %s42, 0
    // Predicated region
    $region22: #{tpu_custom_call.1} parent=1 // pred_check
      %p50 = pneg %p49
    $region23: #{tpu_custom_call.1} parent=1 // pred_check_branch
      %52 = sbr.rel (%p50) target = $region25
    $region24: #{tpu_custom_call.1} parent=1 // pred_region
      %v53 = vld [vmem:[#allocation4] sm:$0xff]
      %v54 = vld [vmem:[#allocation7] ss:$2 sm:$0x3]
      %s55 = scalar_lea.vmem [#allocation7], 1
      %v56 = vld [vmem:[%s55] ss:$2 sm:$0x3]
      %58 = vset.pattern.permute.xlu0 0
      %59 = vperm.xlu0 %58, %v53
      %v60 = vpop.permute.xlu0 %59
      %v63 = vperm.slane %v54, 0
      %v64 = vperm.slane %v54, 1
      %v67 = vmul.f32 %v60, %v63
      %v68 = vmul.f32 %v60, %v64
      %69 = vset.pattern.permute.xlu0 1
      %70 = vperm.xlu0 %69, %v53
      %v71 = vpop.permute.xlu0 %70
      %v74 = vperm.slane %v56, 0
      %v75 = vperm.slane %v56, 1
      %v78 = vmul.f32 %v71, %v74
      %v79 = vmul.f32 %v71, %v75
      %v80 = vadd.f32 %v67, %v78
      %v81 = vadd.f32 %v68, %v79
      %82 = vset.pattern.permute.xlu0 2
      %83 = vperm.xlu0 %82, %v53
      %v84 = vpop.permute.xlu0 %83
      %v86 = vadd.f32 %v80, %v84
      %v87 = vadd.f32 %v81, %v84
      %88 = vset.pattern.permute.xlu0 3
      %89 = vperm.xlu0 %88, %v53
      %v90 = vpop.permute.xlu0 %89
      %v92 = vmul.f32 %v90, %v63
      %v93 = vmul.f32 %v90, %v64
      %94 = vset.pattern.permute.xlu0 4
      %95 = vperm.xlu0 %94, %v53
      %v96 = vpop.permute.xlu0 %95
      %v98 = vmul.f32 %v96, %v74
      %v99 = vmul.f32 %v96, %v75
      %v100 = vadd.f32 %v92, %v98
      %v101 = vadd.f32 %v93, %v99
      %102 = vset.pattern.permute.xlu0 5
      %103 = vperm.xlu0 %102, %v53
      %v104 = vpop.permute.xlu0 %103
      %v106 = vadd.f32 %v100, %v104
      %v107 = vadd.f32 %v101, %v104
      %v108 = vfloor.f32 %v86
      %v109 = vfloor.f32 %v87
      %v110 = vfloor.f32 %v106
      %v111 = vfloor.f32 %v107
      %v112 = vsub.f32 %v86, %v108
      %v113 = vsub.f32 %v87, %v109
      %v114 = vsub.f32 %v106, %v110
      %v115 = vsub.f32 %v107, %v111
      %v116 = vsub.f32 1.0, %v112
      %v117 = vsub.f32 1.0, %v113
      %v118 = vsub.f32 1.0, %v114
      %v119 = vsub.f32 1.0, %v115
      %v120 = vsub.f32 %v108, 8.0
      %v121 = vsub.f32 %v109, 8.0
      %v122 = vsub.f32 %v110, 8.0
      %v123 = vsub.f32 %v111, 8.0
      %v124 = vadd.f32 %v120, 1.0
      %v125 = vadd.f32 %v121, 1.0
      %v126 = vadd.f32 %v122, 1.0
      %v127 = vadd.f32 %v123, 1.0
      %v128 = vmul.f32 %v120, %v120
      %v129 = vmul.f32 %v121, %v121
      %v130 = vmul.f32 %v124, %v124
      %v131 = vmul.f32 %v125, %v125
      %v132 = vmul.f32 %v122, %v122
      %v133 = vmul.f32 %v123, %v123
      %v134 = vmul.f32 %v126, %v126
      %v135 = vmul.f32 %v127, %v127
      %v136 = vadd.f32 %v128, %v132
      %v137 = vadd.f32 %v129, %v133
      %vm138 = vcmp.le.f32.partialorder %v136, 36.0
      %vm139 = vcmp.le.f32.partialorder %v137, 36.0
      %v140 = vadd.f32 %v130, %v132
      %v141 = vadd.f32 %v131, %v133
      %vm142 = vcmp.le.f32.partialorder %v140, 36.0
      %vm143 = vcmp.le.f32.partialorder %v141, 36.0
      %v144 = vadd.f32 %v128, %v134
      %v145 = vadd.f32 %v129, %v135
      %vm146 = vcmp.le.f32.partialorder %v144, 36.0
      %vm147 = vcmp.le.f32.partialorder %v145, 36.0
      %v148 = vadd.f32 %v130, %v134
      %v149 = vadd.f32 %v131, %v135
      %vm150 = vcmp.le.f32.partialorder %v148, 36.0
      %vm151 = vcmp.le.f32.partialorder %v149, 36.0
      %v152 = vmul.f32 %v116, %v118
      %v153 = vmul.f32 %v117, %v119
      %v154 = vsel %vm138, %v152, 0.0
      %v155 = vsel %vm139, %v153, 0.0
      %v156 = vmul.f32 %v112, %v118
      %v157 = vmul.f32 %v113, %v119
      %v158 = vsel %vm142, %v156, 0.0
      %v159 = vsel %vm143, %v157, 0.0
      %v160 = vadd.f32 %v154, %v158
      %v161 = vadd.f32 %v155, %v159
      %v162 = vmul.f32 %v116, %v114
      %v163 = vmul.f32 %v117, %v115
      %v164 = vsel %vm146, %v162, 0.0
      %v165 = vsel %vm147, %v163, 0.0
      %v166 = vadd.f32 %v160, %v164
      %v167 = vadd.f32 %v161, %v165
      %v168 = vmul.f32 %v112, %v114
      %v169 = vmul.f32 %v113, %v115
      %v170 = vsel %vm150, %v168, 0.0
      %v171 = vsel %vm151, %v169, 0.0
      %v172 = vadd.f32 %v166, %v170
      %v173 = vadd.f32 %v167, %v171
      %174 = vset.pattern.permute.xlu0 6
      %175 = vperm.xlu0 %174, %v53
      %v176 = vpop.permute.xlu0 %175
      %v178 = vmul.f32 %v172, %v176
      %v179 = vmul.f32 %v173, %v176
      %180 = vst [vmem:[#allocation9] sm:$0xff] %v178
      %181 = vst [vmem:[#allocation9 + $0x8] sm:$0xff] %v179
    $region25: #{tpu_custom_call.1} parent=1 // pred_fallthru
      _
    // Predicated region
    $region26: #{tpu_custom_call.1} parent=1 // pred_check
      _
    $region27: #{tpu_custom_call.1} parent=1 // pred_check_branch
      %183 = sbr.rel (0) target = $region29
    $region28: #{tpu_custom_call.1} parent=1 // pred_region
      %185 = vsyncadd [#allocation6], 0
      %s187 = sshll.u32 [#allocation9], 4
      %s188 = int_to_ptr.vmem [resolvable:$true] %s187
      %s189 = sshll.u32 %s3, 4
      %s190 = int_to_ptr.hbm [resolvable:$true] %s189
      %192 = dma.vmem_to_hbm [thread:$0]  %s188, 256, %s190, [#allocation6]
    $region29: #{tpu_custom_call.1} parent=1 // pred_fallthru
      _
    // Predicated region
    $region30: #{tpu_custom_call.1} parent=1 // pred_check
      _
    $region31: #{tpu_custom_call.1} parent=1 // pred_check_branch
      %194 = sbr.rel (0) target = $region33
    $region32: #{tpu_custom_call.1} parent=1 // pred_region
      %196 = dma.done [#allocation6], 256
    $region33: #{tpu_custom_call.1} parent=1 // pred_fallthru
      _
    %197 = vsyncpa [#allocation5], 1
    %198 = vsyncpa [#allocation8], 1
    %199 = vsyncpa [#allocation6], 1

</llo_original>
